<compile_context>
chip_gen: v6e
topology: v6e:2x2x1
jax: 0.10.0
libtpu: 0.0.40
codegen_flags: <defaults>
</compile_context>

<pallas_src>
import functools

import jax
import jax.numpy as jnp
from jax import lax
from jax.experimental import pallas as pl
from jax.experimental.pallas import tpu as pltpu


def _round_up(x, m):
    return ((x + m - 1) // m) * m


def _pad_to(a, shape):
    """Zero-pad array `a` into a float32 array of `shape` (top-left corner)."""
    out = jnp.zeros(shape, jnp.float32)
    return out.at[tuple(slice(0, s) for s in a.shape)].set(a.astype(jnp.float32))


# ----------------------------------------------------------------------------
# Hardware queries (trace-time; safe fallbacks if unavailable).
# ----------------------------------------------------------------------------
def _vmem_capacity_bytes():
    try:
        cap = int(pltpu.get_tpu_info().vmem_capacity_bytes)   # 64 MiB v7x, 128 MiB v5e/v6e
        if cap > 0:
            return cap
    except Exception:
        pass
    return 64 * 1024 * 1024                                   # conservative default


def _num_tensorcores():
    try:
        info = pltpu.get_tpu_info()
        for name in ("num_tensorcores", "tensorcore_count", "num_cores", "core_count"):
            v = getattr(info, name, None)
            if v:
                return int(v)
    except Exception:
        pass
    return 1


def _pick_batch_block(B):
    # Split the batch across the leading "parallel" grid axis only where it
    # pays: >= 2 TensorCores per chip (v7x) AND each half still feeds the MXU
    # with >= 128 rows.  On single-TC v5e/v6e the split is a pure loss.
    if _num_tensorcores() >= 2 and B % 16 == 0 and B // 2 >= 128:
        return B // 2
    return B


def _pick_time_chunk(S, b_block, Hp, L, Lu):
    """Largest time chunk whose pipeline footprint fits this chip's VMEM."""
    cap = _vmem_capacity_bytes()
    budget = (cap * 3) // 5                                   # headroom for Mosaic scratch
    # grid-invariant blocks (counted at 2 buffers = worst case / fallback path)
    fixed = 2 * (L + Lu) * Hp * Hp * 2 + 2 * Lu * Hp * 4      # bf16 weights + f32 bias
    fixed += (2 + 2 + 1) * L * b_block * Hp * 4               # h0 in, hN out, h carry
    per_t = (2 + 2 + 1) * b_block * Hp * 4                    # z0 in, y out, chunk buffer
    cands = [c for c in (32, 24, 16, 8) if fixed + c * per_t <= budget] or [8]
    t_chunk = cands[-1]
    for c in cands:                                           # biggest chunk w/ modest padding waste
        if _round_up(S, c) - S <= max(S // 4, c // 2):
            t_chunk = c
            break
    Sp = _round_up(S, t_chunk)
    vmem_limit = min((cap * 9) // 10, 128 * 1024 * 1024)
    return t_chunk, Sp, vmem_limit


# ----------------------------------------------------------------------------
# Tiled linear kernel:  (M, K) @ (K, N) + (1, N), bf16 operands, f32 accumulate.
# Both M and N axes are tiled & "parallel" (feeds 2 TCs on v7x, avoids keeping
# a full (K, N) weight resident for large class counts).
# ----------------------------------------------------------------------------
def _linear_kernel(x_ref, w_ref, b_ref, o_ref):
    o_ref[...] = (
        jnp.dot(x_ref[...], w_ref[...], preferred_element_type=jnp.float32)
        + b_ref[...]
    ).astype(o_ref.dtype)


def linear_pallas(x2, w_t, bias, *, tile_m=256, tile_n=512):
    M, K = x2.shape
    N = w_t.shape[1]                       # lane-padded (multiple of 128)
    tm = min(tile_m, _round_up(M, 8))
    Mp = _round_up(M, tm)
    tn = min(tile_n, N)
    while N % tn:
        tn -= 128

    x2 = x2.astype(jnp.bfloat16)
    if Mp != M:
        x2 = jnp.zeros((Mp, K), jnp.bfloat16).at[:M].set(x2)

    out = pl.pallas_call(
        _linear_kernel,
        out_shape=jax.ShapeDtypeStruct((Mp, N), jnp.float32),
        grid_spec=pltpu.PrefetchScalarGridSpec(
            num_scalar_prefetch=0,
            grid=(Mp // tm, N // tn),
            in_specs=[
                pl.BlockSpec((tm, K), lambda i, j: (i, 0)),
                pl.BlockSpec((K, tn), lambda i, j: (0, j)),
                pl.BlockSpec((1, tn), lambda i, j: (0, j)),
            ],
            out_specs=pl.BlockSpec((tm, tn), lambda i, j: (i, j)),
        ),
        compiler_params=pltpu.CompilerParams(
            dimension_semantics=("parallel", "parallel")),
        cost_estimate=pl.CostEstimate(
            flops=2 * Mp * K * N, transcendentals=0,
            bytes_accessed=2 * Mp * K + 2 * K * N + 4 * Mp * N + 4 * N),
    )(x2, w_t.astype(jnp.bfloat16), bias.astype(jnp.float32))
    return out[:M]


# ----------------------------------------------------------------------------
# Fused multi-layer RNN recurrence kernel.
# Grid = (batch_blocks ["parallel"], time_chunks ["arbitrary"]).
# Per chunk of T timesteps:
#   layer 0:   h_t = tanh(z0[t] + h_{t-1} @ Whh0)        (z0 precomputed / gathered)
#   layer l>0: z   = chunk_prev_layer @ Wih_l + b_l       (one batched bf16 matmul)
#              h_t = tanh(z[t] + h_{t-1} @ Whh_l)
# Hidden state carried across chunks in VMEM; the final layer writes directly
# to the output block; hN written once at the last chunk.  Padded tail steps
# (when S was rounded up to a chunk multiple) do not advance the state.
# ----------------------------------------------------------------------------
def _rnn_stack_kernel(z0_ref, wih_ref, whh_ref, b_ref, h0_ref,
                      y_ref, hN_ref, h_sc, buf, *, true_seq_len):
    c = pl.program_id(1)                   # serial time-chunk axis
    n_layers = whh_ref.shape[0]
    T, Bb, Hp = z0_ref.shape

    @pl.when(c == 0)
    def _():
        h_sc[...] = h0_ref[...]

    def run_layer(l, read_z, out_ref):
        w = whh_ref[l]                     # (Hp, Hp) bf16, hoisted out of the time loop

        def step(t, h):
            h_new = jnp.tanh(read_z(t)
                             + jnp.dot(h.astype(w.dtype), w,
                                       preferred_element_type=jnp.float32))
            if true_seq_len is not None:   # masked padded tail steps keep the state
                h_new = jnp.where(c * T + t < true_seq_len, h_new, h)
            out_ref[t] = h_new.astype(out_ref.dtype)
            return h_new

        # unroll=8 bounds vreg pressure for t_chunk up to 32
        h_sc[l] = lax.fori_loop(0, T, step, h_sc[l], unroll=8)

    # ---- layer 0: input projection precomputed outside the recurrence ----
    run_layer(0, lambda t: z0_ref[t], buf if n_layers > 1 else y_ref)

    # ---- layers 1..L-1: chunk-wide batched input projection, VMEM-resident ----
    for l in range(1, n_layers):
        w_in = wih_ref[l - 1]
        z = (jnp.dot(buf[...].reshape(T * Bb, Hp).astype(w_in.dtype), w_in,
                     preferred_element_type=jnp.float32)
             + b_ref[l - 1]).reshape(T, Bb, Hp)
        buf[...] = z
        run_layer(l, lambda t: buf[t], y_ref if l == n_layers - 1 else buf)

    # hN is a resident output: write once, at the last time chunk.
    @pl.when(c == pl.num_programs(1) - 1)
    def _():
        hN_ref[...] = h_sc[...].astype(hN_ref.dtype)


def rnn_stack(z0, wih, whh, bias, h0, *, t_chunk, b_block, true_seq_len,
              vmem_limit, single_buffer_weights):
    Sp, B, Hp = z0.shape
    L = whh.shape[0]
    Lu = wih.shape[0]
    n_chunks = Sp // t_chunk
    n_bblk = B // b_block

    # grid-invariant inputs never change block -> a single buffer saves VMEM
    weight_mode = dict(pipeline_mode=pl.Buffered(1)) if single_buffer_weights else {}

    kernel = functools.partial(_rnn_stack_kernel, true_seq_len=true_seq_len)
    flops = 2 * Sp * B * Hp * Hp * (2 * L - 1)
    y, hN = pl.pallas_call(
        kernel,
        out_shape=(jax.ShapeDtypeStruct((Sp, B, Hp), jnp.float32),
                   jax.ShapeDtypeStruct((L, B, Hp), jnp.float32)),
        grid_spec=pltpu.PrefetchScalarGridSpec(
            num_scalar_prefetch=0,
            grid=(n_bblk, n_chunks),
            in_specs=[
                pl.BlockSpec((t_chunk, b_block, Hp), lambda b, c: (c, b, 0)),
                pl.BlockSpec((Lu, Hp, Hp), lambda b, c: (0, 0, 0), **weight_mode),
                pl.BlockSpec((L, Hp, Hp), lambda b, c: (0, 0, 0), **weight_mode),
                pl.BlockSpec((Lu, 1, Hp), lambda b, c: (0, 0, 0), **weight_mode),
                pl.BlockSpec((L, b_block, Hp), lambda b, c: (0, b, 0)),
            ],
            out_specs=[
                pl.BlockSpec((t_chunk, b_block, Hp), lambda b, c: (c, b, 0)),
                pl.BlockSpec((L, b_block, Hp), lambda b, c: (0, b, 0)),
            ],
            scratch_shapes=[
                pltpu.VMEM((L, b_block, Hp), jnp.float32),                    # hidden carry
                pltpu.VMEM((t_chunk if L > 1 else 8, b_block, Hp), jnp.float32),  # chunk buffer
            ],
        ),
        compiler_params=pltpu.CompilerParams(
            dimension_semantics=("parallel", "arbitrary"),
            vmem_limit_bytes=vmem_limit),
        cost_estimate=pl.CostEstimate(
            flops=flops,
            transcendentals=Sp * B * Hp * L,
            bytes_accessed=4 * (2 * Sp * B * Hp + 2 * L * B * Hp)
                           + 2 * (L + Lu) * Hp * Hp + 4 * Lu * Hp),
    )(z0, wih, whh, bias, h0)
    return y, hN


# ----------------------------------------------------------------------------
# One-time weight preprocessing (run OUTSIDE the per-step jit).
# ----------------------------------------------------------------------------
def prepare_params(params, table_bytes_limit=32 * 1024 * 1024):
    rnn_ps = params["rnn"]
    L = len(rnn_ps)
    H = rnn_ps[0]["w_hh"].shape[0]
    V, D = params["embedding"].shape
    C = params["fc_w"].shape[0]
    Hp = _round_up(H, 128)     # lane-dense hidden
    Cp = _round_up(C, 128)     # lane-dense classes

    # recurrent weights, all layers (bf16, lane-padded, pre-transposed)
    whh = jnp.stack([_pad_to(p["w_hh"].T, (Hp, Hp)) for p in rnn_ps]).astype(jnp.bfloat16)

    # input-projection weights for layers 1..L-1 only (no dummy layer-0 slot)
    Lu = max(L - 1, 1)
    wih = jnp.zeros((Lu, Hp, Hp), jnp.float32)
    b_u = jnp.zeros((Lu, 1, Hp), jnp.float32)
    for l in range(1, L):
        p = rnn_ps[l]
        wih = wih.at[l - 1].set(_pad_to(p["w_ih"].T, (Hp, Hp)))
        b_u = b_u.at[l - 1].set(_pad_to((p["b_ih"] + p["b_hh"]).reshape(1, H), (1, Hp)))
    wih = wih.astype(jnp.bfloat16)

    # layer-0 input projection
    w0t = _pad_to(rnn_ps[0]["w_ih"].T, (D, Hp)).astype(jnp.bfloat16)
    b0 = _pad_to((rnn_ps[0]["b_ih"] + rnn_ps[0]["b_hh"]).reshape(1, H), (1, Hp))

    prep = {
        "whh": whh, "wih": wih, "b_u": b_u,
        "fc_wt": _pad_to(params["fc_w"].T, (Hp, Cp)).astype(jnp.bfloat16),
        "fc_b": _pad_to(params["fc_b"].reshape(1, C), (1, Cp)),
    }

    if V * Hp * 4 <= table_bytes_limit:
        # pre-projected embedding table: layer-0 projection becomes one gather
        prep["z_table"] = linear_pallas(params["embedding"].astype(jnp.float32),
                                        w0t, b0)                  # (V, Hp) f32
    else:
        prep["emb"] = params["embedding"].astype(jnp.float32)
        prep["w0t"] = w0t
        prep["b0"] = b0
    return prep


# ----------------------------------------------------------------------------
# Full forward pass (matches PretrainedRNN.forward, bidirectional=False,
# eval-mode dropout).
# ----------------------------------------------------------------------------
def pretrained_rnn_forward(prep, tokens, hidden_state=None, *,
                           hidden_size, num_classes, single_buffer_weights=True):
    S, B = tokens.shape
    L, _, Hp = prep["whh"].shape
    Cp = prep["fc_wt"].shape[1]
    H, C = hidden_size, num_classes

    if hidden_state is not None:
        assert hidden_state.shape[1] == B, "Batch size must be equal"

    # ---- embedding + layer-0 input projection ----
    if "z_table" in prep:
        z0 = jnp.take(prep["z_table"], tokens, axis=0)            # (S, B, Hp) gather
    else:
        x = jnp.take(prep["emb"], tokens, axis=0)                 # (S, B, D)
        z0 = linear_pallas(x.reshape(S * B, x.shape[-1]),
                           prep["w0t"], prep["b0"]).reshape(S, B, Hp)

    if hidden_state is None:
        h0 = jnp.zeros((L, B, Hp), jnp.float32)
    else:
        h0 = jnp.zeros((L, B, Hp), jnp.float32).at[:, :, :H].set(
            hidden_state.astype(jnp.float32))

    # ---- generation-aware tiling ----
    b_block = _pick_batch_block(B)
    t_chunk, Sp, vmem_limit = _pick_time_chunk(S, b_block, Hp, L, prep["wih"].shape[0])
    if Sp != S:
        z0 = jnp.zeros((Sp, B, Hp), jnp.float32).at[:S].set(z0)

    y, hN = rnn_stack(z0, prep["wih"], prep["whh"], prep["b_u"], h0,
                      t_chunk=t_chunk, b_block=b_block,
                      true_seq_len=S if Sp != S else None,
                      vmem_limit=vmem_limit,
                      single_buffer_weights=single_buffer_weights)

    # Dropout: eval-mode identity.
    # TODO(synk): training-mode dropout (stochastic mask) not implemented.

    logits = linear_pallas(y[:S].reshape(S * B, Hp), prep["fc_wt"], prep["fc_b"])
    logits = logits.reshape(S, B, Cp)[:, :, :C]
    hidden = hN[:, :, :H]
    return logits, hidden


# ----------------------------------------------------------------------------
# Pure-JAX reference for correctness checking.  It mirrors the kernel's
# numeric path (bf16 matmul operands, f32 accumulation) so the tolerance can
# stay tight; structurally it is exactly the PyTorch module's forward.
# ----------------------------------------------------------------------------
def _bf16_dot(a, b):
    return jnp.dot(a.astype(jnp.bfloat16), b.astype(jnp.bfloat16),
                   preferred_element_type=jnp.float32)


def reference_forward(params, tokens, hidden_state=None):
    num_layers = len(params["rnn"])
    H = params["rnn"][0]["w_hh"].shape[0]
    S, B = tokens.shape
    x = jnp.take(params["embedding"], tokens, axis=0).astype(jnp.float32)
    if hidden_state is None:
        hidden_state = jnp.zeros((num_layers, B, H), jnp.float32)

    h_finals = []
    layer_in = x
    for l in range(num_layers):
        p = params["rnn"][l]
        bias = (p["b_ih"] + p["b_hh"]).astype(jnp.float32)

        def step(h, x_t, p=p, bias=bias):
            h_new = jnp.tanh(_bf16_dot(x_t, p["w_ih"].T) + bias
                             + _bf16_dot(h, p["w_hh"].T))
            return h_new, h_new

        hN, ys = lax.scan(step, hidden_state[l], layer_in)
        h_finals.append(hN)
        layer_in = ys
    hidden = jnp.stack(h_finals, axis=0)
    logits = _bf16_dot(layer_in, params["fc_w"].T) + params["fc_b"]
    return logits, hidden


# ----------------------------------------------------------------------------
# Deterministic parameter construction (shapes per the module's __init__).
# ----------------------------------------------------------------------------
def make_params(key, vocab, dim, hidden, num_layers, num_classes, padding_idx):
    keys = jax.random.split(key, 3 + 4 * num_layers)
    kiter = iter(keys)

    emb = jax.random.normal(next(kiter), (vocab, dim), jnp.float32) * 0.1
    emb = emb.at[padding_idx].set(0.0)           # _fill_padding_idx_with_zero

    bound = 1.0 / jnp.sqrt(hidden)
    rnn_layers = []
    for l in range(num_layers):
        d_in = dim if l == 0 else hidden
        rnn_layers.append({
            "w_ih": jax.random.uniform(next(kiter), (hidden, d_in),
                                       jnp.float32, -bound, bound),
            "w_hh": jax.random.uniform(next(kiter), (hidden, hidden),
                                       jnp.float32, -bound, bound),
            "b_ih": jax.random.uniform(next(kiter), (hidden,),
                                       jnp.float32, -bound, bound),
            "b_hh": jax.random.uniform(next(kiter), (hidden,),
                                       jnp.float32, -bound, bound),
        })

    fc_w = jax.random.uniform(next(kiter), (num_classes, hidden),
                              jnp.float32, -bound, bound)
    fc_b = jax.random.uniform(next(kiter), (num_classes,),
                              jnp.float32, -bound, bound)
    return {"embedding": emb, "rnn": rnn_layers, "fc_w": fc_w, "fc_b": fc_b}


if __name__ == "__main__":
    # Small deterministic config; S=40 exercises multiple time chunks AND the
    # padded-tail masking path (t_chunk=24 -> Sp=48).
    vocab, dim = 32, 16
    hidden_size = 32
    num_layers = 2
    num_classes = 4
    padding_idx = 0
    seq_len, batch = 40, 8

    key = jax.random.PRNGKey(0)
    pkey, tkey = jax.random.split(key)
    params = make_params(pkey, vocab, dim, hidden_size, num_layers,
                         num_classes, padding_idx)
    tokens = jax.random.randint(tkey, (seq_len, batch), 0, vocab, jnp.int32)

    prep = prepare_params(params)        # one-time weight preprocessing

    def build_fwd(single_buffer_weights):
        return jax.jit(functools.partial(
            pretrained_rnn_forward, hidden_size=hidden_size,
            num_classes=num_classes,
            single_buffer_weights=single_buffer_weights))

    try:
        logits, hidden = build_fwd(True)(prep, tokens)
        logits, hidden = jax.block_until_ready((logits, hidden))
    except Exception:
        # pl.Buffered(1) single-buffering unsupported on this build -> default buffering.
        logits, hidden = build_fwd(False)(prep, tokens)
        logits, hidden = jax.block_until_ready((logits, hidden))

    assert logits.shape == (seq_len, batch, num_classes)
    assert hidden.shape == (num_layers, batch, hidden_size)

    ref_logits, ref_hidden = reference_forward(params, tokens)
    assert jnp.allclose(logits, ref_logits, rtol=1e-2, atol=1e-2), \
        float(jnp.max(jnp.abs(logits - ref_logits)))
    assert jnp.allclose(hidden, ref_hidden, rtol=1e-2, atol=1e-2), \
        float(jnp.max(jnp.abs(hidden - ref_hidden)))

    print("KERNEL_OK")
</pallas_src>

<mosaic_0001>
module attributes {stable_mosaic.version = 11 : i64} {
  func.func @_linear_kernel(%arg0: i32, %arg1: i32, %arg2: memref<32x16xbf16, #tpu.memory_space<vmem>>, %arg3: memref<16x128xbf16, #tpu.memory_space<vmem>>, %arg4: memref<1x128xf32, #tpu.memory_space<vmem>>, %arg5: memref<32x128xf32, #tpu.memory_space<vmem>>) attributes {dimension_semantics = [#tpu.dimension_semantics<parallel>, #tpu.dimension_semantics<parallel>], iteration_bounds = array<i64: 1, 1>, scalar_prefetch = 0 : i64, scratch_operands = 0 : i64, tpu.core_type = #tpu.core_type<tc>, window_params = [{transform_indices = @transform_0, window_bounds = array<i64: 32, 16>}, {transform_indices = @transform_1, window_bounds = array<i64: 16, 128>}, {transform_indices = @transform_2, window_bounds = array<i64: 1, 128>}, {transform_indices = @transform_3, window_bounds = array<i64: 32, 128>}]} {
    %c0 = arith.constant 0 : index
    %c0_0 = arith.constant 0 : index
    %0 = vector.load %arg2[%c0, %c0_0] : memref<32x16xbf16, #tpu.memory_space<vmem>>, vector<32x16xbf16>
    %c0_1 = arith.constant 0 : index
    %c0_2 = arith.constant 0 : index
    %1 = vector.load %arg3[%c0_1, %c0_2] : memref<16x128xbf16, #tpu.memory_space<vmem>>, vector<16x128xbf16>
    %cst = arith.constant dense<0.000000e+00> : vector<32x128xf32>
    %2 = tpu.matmul %0, %1, %cst {dimension_numbers = #tpu.dot_dimension_numbers<[1], [0], [0], [1], [0, 0, 1, 1], [], []>} : vector<32x16xbf16>, vector<16x128xbf16>, vector<32x128xf32> -> vector<32x128xf32>
    %c0_3 = arith.constant 0 : index
    %c0_4 = arith.constant 0 : index
    %3 = vector.load %arg4[%c0_3, %c0_4] : memref<1x128xf32, #tpu.memory_space<vmem>>, vector<1x128xf32>
    %4 = vector.broadcast %3 : vector<1x128xf32> to vector<32x128xf32>
    %5 = arith.addf %2, %4 : vector<32x128xf32>
    %c0_5 = arith.constant 0 : index
    %c0_6 = arith.constant 0 : index
    %6 = vector.load %arg5[%c0_5, %c0_6] : memref<32x128xf32, #tpu.memory_space<vmem>>, vector<32x128xf32>
    tpu.vector_store %arg5[%c0_5, %c0_6], %5 {strides = array<i32>} : memref<32x128xf32, #tpu.memory_space<vmem>>, vector<32x128xf32>,
    return
  }
  func.func @transform_0(%arg0: i32, %arg1: i32) -> (i32, i32) {
    %c0_i32 = arith.constant 0 : i32
    %c0_i32_0 = arith.constant 0 : i32
    return %arg0, %c0_i32 : i32, i32
  }
  func.func @transform_1(%arg0: i32, %arg1: i32) -> (i32, i32) {
    %c0_i32 = arith.constant 0 : i32
    %c0_i32_0 = arith.constant 0 : i32
    return %c0_i32, %arg1 : i32, i32
  }
  func.func @transform_2(%arg0: i32, %arg1: i32) -> (i32, i32) {
    %c0_i32 = arith.constant 0 : i32
    %c0_i32_0 = arith.constant 0 : i32
    return %c0_i32, %arg1 : i32, i32
  }
  func.func @transform_3(%arg0: i32, %arg1: i32) -> (i32, i32) {
    %c0_i32 = arith.constant 0 : i32
    return %arg0, %arg1 : i32, i32
  }
}

</mosaic_0001>

<llo_original>
// kernel: tpu_custom_call.1
$region0: #{tpu_custom_call.1}
  #allocation0 [shape = 'u32[]', space=smem, size = 0x4, offset = 0x4, fixed_abs, tag = 'smem constant byte address 0x4 - core index']
  #allocation1 [shape = 'u32[144,128]{1,0:T(1,128)}', space=vmem, size = 0x12000, scoped, tag = 'internal scratch']
  %s0 = inlined_call_operand.vmem [shape: bf16[32,16], index: 0, kind: input, shape index: {}]
  %s1 = inlined_call_operand.vmem [shape: bf16[16,128], index: 1, kind: input, shape index: {}]
  %s2 = inlined_call_operand.vmem [shape: f32[1,128], index: 2, kind: input, shape index: {}]
  %s3 = inlined_call_operand.hbm [shape: f32[32,128], index: 3, kind: output, shape index: {}]
  %s4 = sld [smem:[#allocation0]]
  $region22: #{tpu_custom_call.1} parent=0
    _
  %s6 = ssub.s32 1, %s4
  %s7 = scalar_select 0, %s6, %s4
  $region1: #{tpu_custom_call.1} parent=0
    #allocation2 [shape = 'u8[16384]{0}', space=vmem, size = 0x4000, scoped, tag = 'output window, operand 0, single buffered']
    #allocation3 [shape = 's32[1]{0}', space=sflag, size = 0x4, scoped, tag = 'scoped memory for tpu_custom_call.1']
    %8 = vsyncpa [#allocation3], 0
    // Predicated region
    $region2: #{tpu_custom_call.1} parent=1 // pred_check
      _
    $region3: #{tpu_custom_call.1} parent=1 // pred_check_branch
      %10 = sbr.rel (0) target = $region5
    $region4: #{tpu_custom_call.1} parent=1 // pred_region
      _
    $region5: #{tpu_custom_call.1} parent=1 // pred_fallthru
      _
    // Predicated region
    $region6: #{tpu_custom_call.1} parent=1 // pred_check
      _
    $region7: #{tpu_custom_call.1} parent=1 // pred_check_branch
      %12 = sbr.rel (0) target = $region9
    $region8: #{tpu_custom_call.1} parent=1 // pred_region
      _
    $region9: #{tpu_custom_call.1} parent=1 // pred_fallthru
      _
    // Predicated region
    $region10: #{tpu_custom_call.1} parent=1 // pred_check
      _
    $region11: #{tpu_custom_call.1} parent=1 // pred_check_branch
      %14 = sbr.rel (0) target = $region13
    $region12: #{tpu_custom_call.1} parent=1 // pred_region
      _
    $region13: #{tpu_custom_call.1} parent=1 // pred_fallthru
      _
    %v16 = vld [vmem:[%s0] sm:$0xf]
    %v17 = vld [vmem:[%s0 + $0x4] sm:$0xf]
    %v18 = vld [vmem:[%s0 + $0x8] sm:$0xf]
    %v19 = vld [vmem:[%s0 + $0xc] sm:$0xf]
    %v20 = vld [vmem:[%s1] sm:$0xf]
    %v21 = vld [vmem:[%s1 + $0x4] sm:$0xf]
    %v22 = vld [vmem:[%s2] sm:$0x1]
    %v24 = vlaneseq
    %v25 = vshrl.u32 %v24, 7
    %v26 = vsub.s32 0, %v25
    %v27 = vrot.slane %v22, %v26
    %v33 = vunpack.c.l.b16 %v16
    %v34 = vunpack.c.l.b16 %v17
    %v35 = vunpack.c.l.b16 %v18
    %v36 = vunpack.c.l.b16 %v19
    %v37 = vpack.c.b16 %v34, %v33
    %v38 = vpack.c.b16 %v36, %v35
    %v41 = vunpack.c.l.b16 %v20
    %v42 = vunpack.c.l.b16 %v21
    %v43 = vpack.c.b16 %v42, %v41
    %vm45 = vcmask 130048
    %v47 = vsel %vm45, %v37, 0
    %v50 = vsel %vm45, %v38, 0
    %52 = vmatprep.subr.bf16.mxu0 0
    %53 = vmatpush1.bf16.msra.mxu0 0
    %54 = vmatprep.subr.bf16.mxu0 0
    %55 = vmatpush1.bf16.msra.mxu0 0
    %56 = vmatprep.subr.bf16.mxu0 0
    %57 = vmatpush1.bf16.msra.mxu0 0
    %58 = vmatprep.subr.bf16.mxu0 0
    %59 = vmatpush1.bf16.msra.mxu0 0
    %60 = vmatprep.subr.bf16.mxu0 0
    %61 = vmatpush1.bf16.msra.mxu0 0
    %62 = vmatprep.subr.bf16.mxu0 0
    %63 = vmatpush1.bf16.msra.mxu0 0
    %64 = vmatprep.subr.bf16.mxu0 0
    %65 = vmatpush1.bf16.msra.mxu0 0
    %66 = vmatprep.subr.bf16.mxu0 0
    %67 = vmatpush1.bf16.msra.mxu0 %v43
    %68 = vmatprep.subr.bf16.mxu0 0
    %69 = vmatpush2.bf16.msra.mxu0 0
    %70 = vmatprep.subr.bf16.mxu0 0
    %71 = vmatpush2.bf16.msra.mxu0 0
    %72 = vmatprep.subr.bf16.mxu0 0
    %73 = vmatpush2.bf16.msra.mxu0 0
    %74 = vmatprep.subr.bf16.mxu0 0
    %75 = vmatpush2.bf16.msra.mxu0 0
    %76 = vmatprep.subr.bf16.mxu0 0
    %77 = vmatpush2.bf16.msra.mxu0 0
    %78 = vmatprep.subr.bf16.mxu0 0
    %79 = vmatpush2.bf16.msra.mxu0 0
    %80 = vmatprep.subr.bf16.mxu0 0
    %81 = vmatpush2.bf16.msra.mxu0 0
    %82 = vmatprep.subr.bf16.mxu0 0
    %83 = vmatpush2.bf16.msra.mxu0 0
    %84 = vmatprep.mubr.bf16.mxu0 0
    %85 = vmatmul.mubr.bf16.gmra.mxu0 %v47
    %v86 = vpop.f32.mrf.mxu0
    %v87 = vadd.f32 %v27, %v86
    %v88 = vpop.f32.mrf.mxu0
    %v89 = vpop.f32.mrf.mxu0
    %v90 = vadd.f32 %v27, %v89
    %v91 = vpop.f32.mrf.mxu0
    %92 = vmatprep.mubr.bf16.mxu0 0
    %93 = vmatmul.mubr.bf16.gmra.mxu0 %v50
    %v94 = vpop.f32.mrf.mxu0
    %v95 = vadd.f32 %v27, %v94
    %v96 = vpop.f32.mrf.mxu0
    %v97 = vpop.f32.mrf.mxu0
    %v98 = vadd.f32 %v27, %v97
    %v99 = vpop.f32.mrf.mxu0
    %100 = vdwg.mxu0
    %101 = vst [vmem:[#allocation2] sm:$0xff] %v87
    %102 = vst [vmem:[#allocation2 + $0x8] sm:$0xff] %v90
    %103 = vst [vmem:[#allocation2 + $0x10] sm:$0xff] %v95
    %104 = vst [vmem:[#allocation2 + $0x18] sm:$0xff] %v98
    // Predicated region
    $region14: #{tpu_custom_call.1} parent=1 // pred_check
      _
    $region15: #{tpu_custom_call.1} parent=1 // pred_check_branch
      %106 = sbr.rel (0) target = $region17
    $region16: #{tpu_custom_call.1} parent=1 // pred_region
      %s108 = ssub.s32 512, 512
      %109 = vsyncadd [#allocation3], %s108
      %s110 = sshll.u32 [#allocation2], 4
      %s111 = int_to_ptr.vmem [resolvable:$true] %s110
      %116 = dma.vmem_to_hbm [thread:$0]  %s111, 512, %s3, [#allocation3], 128, 128, 8
    $region17: #{tpu_custom_call.1} parent=1 // pred_fallthru
      _
    // Predicated region
    $region18: #{tpu_custom_call.1} parent=1 // pred_check
      _
    $region19: #{tpu_custom_call.1} parent=1 // pred_check_branch
      %118 = sbr.rel (0) target = $region21
    $region20: #{tpu_custom_call.1} parent=1 // pred_region
      %119 = dma.done [#allocation3], 512
    $region21: #{tpu_custom_call.1} parent=1 // pred_fallthru
      _
    %120 = vsyncpa [#allocation3], 1

</llo_original>
